<compile_context>
chip_gen: v7x
topology: tpu7x:2x2x1
jax: 0.10.0
libtpu: 0.0.40
codegen_flags: <defaults>
</compile_context>

<pallas_src>
import jax
import jax.numpy as jnp
from jax.experimental import pallas as pl
from jax.experimental.pallas import tpu as pltpu


def st_gcn_kernel(x_ref, xres_ref, Bg_ref, Wt_ref, Wr_ref, bias_ref, out_ref):
    """One (batch-block, vertex-block) tile per grid step."""
    _, Nb, T, vbCo = out_ref.shape
    vbCin = Wr_ref.shape[0]
    kt = Wt_ref.shape[0] // vbCo
    pad = (kt - 1) // 2
    wdt = Wt_ref.dtype
    M = Nb * T

    x = x_ref[...].reshape(M, x_ref.shape[-1])      # (M, V*Cin), leading-dim merge only
    bias = bias_ref[0]                              # (3, vb*Co) f32, packed
    b_gcn, b_tcn, b_res = bias[0:1, :], bias[1:2, :], bias[2:3, :]

    # --- GCN 1x1 conv fused with adjacency contraction (BN1 scale pre-folded) ---
    z = jnp.dot(x, Bg_ref[0], preferred_element_type=jnp.float32)
    z = jnp.maximum(z + b_gcn, 0.0)                 # BN1 shift + ReLU (f32 on VPU)

    # --- temporal conv (kt,1), same T-padding, single deep-K matmul ---
    zw = z.astype(wdt)                              # hoisted cast (once, not per tap)
    z3 = zw.reshape(Nb, T, vbCo)
    if pad > 0:
        zpad = jnp.zeros((Nb, pad, vbCo), wdt)
        zp = jnp.concatenate([zpad, z3, zpad], axis=1)
    else:
        zp = z3
    # im2col along lanes: columns ordered (dt, vertex-in-block, channel)
    zcat = jnp.concatenate([zp[:, dt:dt + T, :] for dt in range(kt)], axis=-1)
    tc = jnp.dot(zcat.reshape(M, kt * vbCo), Wt_ref[...],
                 preferred_element_type=jnp.float32) + b_tcn   # BN2 (scale folded)

    # --- residual branch: per-vertex 1x1 conv + BN_r (scale folded) ---
    xres = xres_ref[0].reshape(M, vbCin)
    res = jnp.dot(xres, Wr_ref[...], preferred_element_type=jnp.float32) + b_res

    out = jnp.maximum(tc + res, 0.0)
    out_ref[...] = out.reshape(1, Nb, T, vbCo).astype(out_ref.dtype)


def _const_spec(shape):
    """Grid-invariant weight: single-buffered (its block index never changes)."""
    nd = len(shape)
    try:
        return pl.BlockSpec(shape, lambda n, v, _nd=nd: (0,) * _nd,
                            pipeline_mode=pl.Buffered(1))
    except TypeError:   # BlockSpec without pipeline_mode support
        return pl.BlockSpec(shape, lambda n, v, _nd=nd: (0,) * _nd)


def st_gcn_forward(x, A, P, *, eps=1e-5, matmul_dtype=jnp.bfloat16, batch_block=8):
    """x: (N, Cin, T, V) f32, A: (K, V, V) f32, P: raw module params. Returns (out, A)."""
    N, Cin, T, V = x.shape
    K, Co, _ = P["wg"].shape
    kt = P["wt"].shape[0]

    # vertex-block size: >= 128 output lanes per grid step, dividing V
    vb = max(1, (128 + Co - 1) // Co)
    while V % vb:
        vb -= 1
    nvb = V // vb
    vbCin, vbCo = vb * Cin, vb * Co

    # ---- fold eval-mode BN into scale/shift ----
    def fold_bn(bn):
        g, b, m, v = bn
        s = g / jnp.sqrt(v + eps)
        return s, b - m * s

    s1, h1 = fold_bn(P["bn1"])
    s2, h2 = fold_bn(P["bn2"])
    sr, hr = fold_bn(P["bnr"])

    # fused GCN weight/bias; vertex-major rows (v,c) and cols (w,o); BN1 scale folded
    Bg = (jnp.einsum("koc,kvw->vcwo", P["wg"], A) * s1).reshape(V * Cin, V * Co)
    Bg = Bg.reshape(V * Cin, nvb, vbCo).transpose(1, 0, 2)        # (nvb, V*Cin, vb*Co)
    b_gcn = (jnp.einsum("ko,kvw->wo", P["bg"], A) * s1 + h1).reshape(nvb, vbCo)

    eye_vb = jnp.eye(vb, dtype=jnp.float32)
    # per-vertex temporal conv weight, deep-K (dt, vi, c) x (vi, o); BN2 scale folded
    Wt = jnp.einsum("doc,uv->ducvo", P["wt"] * s2[None, :, None], eye_vb)
    Wt = Wt.reshape(kt * vbCo, vbCo)
    b_tcn = jnp.tile(s2 * P["bt"] + h2, (V,)).reshape(nvb, vbCo)

    # per-vertex residual 1x1 weight; BN_r scale folded
    Wr = jnp.einsum("oc,uv->ucvo", P["wr"] * sr[:, None], eye_vb).reshape(vbCin, vbCo)
    b_res = jnp.tile(sr * P["br"] + hr, (V,)).reshape(nvb, vbCo)

    bias_all = jnp.stack([b_gcn, b_tcn, b_res], axis=1).astype(jnp.float32)

    # activations: (N, Cin, T, V) -> vertex-major (N, T, V*Cin)
    xt = x.transpose(0, 2, 3, 1).reshape(N, T, V * Cin).astype(matmul_dtype)
    xres = xt.reshape(N, T, nvb, vbCin).transpose(2, 0, 1, 3)     # (nvb, N, T, vb*Cin)
    Bg, Wt, Wr = (w.astype(matmul_dtype) for w in (Bg, Wt, Wr))

    # batch block: keep >= 2 batch steps (v7x megacore / pipeline depth) and Nb | N.
    # At production widths size batch_block so Nb*T >= 256 rows feed the MXU per step.
    Nb = min(N, batch_block)
    if pl.cdiv(N, Nb) < 2 and N > 1:
        Nb = pl.cdiv(N, 2)
    while N % Nb:
        Nb -= 1
    grid = (pl.cdiv(N, Nb), nvb)

    grid_spec = pltpu.PrefetchScalarGridSpec(
        num_scalar_prefetch=0,
        grid=grid,
        in_specs=[
            pl.BlockSpec((Nb, T, V * Cin), lambda n, v: (n, 0, 0)),   # x (resident over v)
            pl.BlockSpec((1, Nb, T, vbCin), lambda n, v: (v, n, 0, 0)),  # x, this v-block
            pl.BlockSpec((1, V * Cin, vbCo), lambda n, v: (v, 0, 0)),    # GCN weight cols
            _const_spec((kt * vbCo, vbCo)),                              # temporal weight
            _const_spec((vbCin, vbCo)),                                  # residual weight
            pl.BlockSpec((1, 3, vbCo), lambda n, v: (v, 0, 0)),          # packed biases
        ],
        out_specs=pl.BlockSpec((1, Nb, T, vbCo), lambda n, v: (v, n, 0, 0)),
    )

    out = pl.pallas_call(
        st_gcn_kernel,
        out_shape=jax.ShapeDtypeStruct((nvb, N, T, vbCo), jnp.float32),
        grid_spec=grid_spec,
        compiler_params=pltpu.CompilerParams(
            dimension_semantics=("parallel", "parallel"),
            # raise (<= physical: 128 MiB v5e/v6e, 64 MiB v7x) when tiles grow
            vmem_limit_bytes=32 * 1024 * 1024),
    )(xt, xres, Bg, Wt, Wr, bias_all)

    # back to the module's (N, Cout, T, V) layout
    out = (out.reshape(nvb, N, T, vb, Co)
              .transpose(1, 4, 2, 0, 3)
              .reshape(N, Co, T, V))
    return out, A


# ----------------------------- reference (pure JAX) -----------------------------
def _bn_eval(u, g, b, m, v, eps=1e-5):
    rs = lambda a: a.reshape(1, -1, 1, 1)
    return (u - rs(m)) * (rs(g) / jnp.sqrt(rs(v) + eps)) + rs(b)


def st_gcn_ref(x, A, P):
    N, Cin, T, V = x.shape
    K, Co, _ = P["wg"].shape
    kt = P["wt"].shape[0]
    pad = (kt - 1) // 2
    y = jnp.einsum("koc,nctv->nkotv", P["wg"], x) + P["bg"].reshape(1, K, Co, 1, 1)
    z = jnp.einsum("nkotv,kvw->notw", y, A)
    z = jax.nn.relu(_bn_eval(z, *P["bn1"]))
    zp = jnp.pad(z, ((0, 0), (0, 0), (pad, pad), (0, 0)))
    conv = sum(jnp.einsum("oi,nitv->notv", P["wt"][dt], zp[:, :, dt:dt + T, :])
               for dt in range(kt)) + P["bt"].reshape(1, Co, 1, 1)
    conv = _bn_eval(conv, *P["bn2"])
    res = jnp.einsum("oc,nctv->notv", P["wr"], x) + P["br"].reshape(1, Co, 1, 1)
    res = _bn_eval(res, *P["bnr"])
    return jax.nn.relu(conv + res), A


# ---------------------------------- main -----------------------------------------
if __name__ == "__main__":
    # kernel_size = (kt, K) = (3, 3); Cin != Co exercises the conv-residual branch
    N, Cin, Co, T, V, K, kt = 4, 16, 32, 32, 16, 3, 3

    key = jax.random.PRNGKey(0)
    ks = jax.random.split(key, 12)

    def bn_params(k, c):
        k1, k2, k3, k4 = jax.random.split(k, 4)
        gamma = 1.0 + 0.1 * jax.random.normal(k1, (c,), jnp.float32)
        beta = 0.1 * jax.random.normal(k2, (c,), jnp.float32)
        mean = 0.1 * jax.random.normal(k3, (c,), jnp.float32)
        var = 1.0 + 0.1 * jax.random.uniform(k4, (c,), jnp.float32)
        return gamma, beta, mean, var

    P = {
        "wg": 0.2 * jax.random.normal(ks[0], (K, Co, Cin), jnp.float32),
        "bg": 0.1 * jax.random.normal(ks[1], (K, Co), jnp.float32),
        "wt": 0.2 * jax.random.normal(ks[2], (kt, Co, Co), jnp.float32),
        "bt": 0.1 * jax.random.normal(ks[3], (Co,), jnp.float32),
        "wr": 0.2 * jax.random.normal(ks[4], (Co, Cin), jnp.float32),
        "br": 0.1 * jax.random.normal(ks[5], (Co,), jnp.float32),
        "bn1": bn_params(ks[6], Co),
        "bn2": bn_params(ks[7], Co),
        "bnr": bn_params(ks[8], Co),
    }

    # inputs: graph sequence (N, Cin, T, V) and row-normalized adjacency (K, V, V)
    x = jax.random.normal(ks[9], (N, Cin, T, V), jnp.float32)
    A = jax.random.uniform(ks[10], (K, V, V), jnp.float32)
    A = A / jnp.sum(A, axis=-1, keepdims=True)

    ref_out, _ = st_gcn_ref(x, A, P)

    # exact-path check (f32 matmuls, tight tolerance)
    out_f32, A_out = st_gcn_forward(x, A, P, matmul_dtype=jnp.float32)
    out_f32 = jax.block_until_ready(out_f32)
    assert out_f32.shape == (N, Co, T, V)
    assert jnp.allclose(out_f32, ref_out, rtol=1e-3, atol=1e-3), "f32 mismatch vs reference"

    # recommended MXU path: bf16 operands, f32 accumulation (looser tolerance)
    out_bf16, _ = st_gcn_forward(x, A, P, matmul_dtype=jnp.bfloat16)
    out_bf16 = jax.block_until_ready(out_bf16)
    assert jnp.allclose(out_bf16, ref_out, rtol=5e-2, atol=5e-2), "bf16 mismatch vs reference"

    print("KERNEL_OK")
</pallas_src>

<mosaic_0001>
module attributes {stable_mosaic.version = 11 : i64} {
  func.func @st_gcn_kernel(%arg0: i32, %arg1: i32, %arg2: memref<2x32x256xf32, #tpu.memory_space<vmem>>, %arg3: memref<1x2x32x64xf32, #tpu.memory_space<vmem>>, %arg4: memref<1x256x128xf32, #tpu.memory_space<vmem>>, %arg5: memref<384x128xf32, #tpu.memory_space<vmem>>, %arg6: memref<64x128xf32, #tpu.memory_space<vmem>>, %arg7: memref<1x3x128xf32, #tpu.memory_space<vmem>>, %arg8: memref<1x2x32x128xf32, #tpu.memory_space<vmem>>) attributes {dimension_semantics = [#tpu.dimension_semantics<parallel>, #tpu.dimension_semantics<parallel>], iteration_bounds = array<i64: 2, 4>, scalar_prefetch = 0 : i64, scratch_operands = 0 : i64, tpu.core_type = #tpu.core_type<tc>, window_params = [{transform_indices = @transform_0, window_bounds = array<i64: 2, 32, 256>}, {transform_indices = @transform_1, window_bounds = array<i64: 1, 2, 32, 64>}, {transform_indices = @transform_2, window_bounds = array<i64: 1, 256, 128>}, {pipeline_mode = #tpu.pipeline_mode<synchronous>, transform_indices = @transform_3, window_bounds = array<i64: 384, 128>}, {pipeline_mode = #tpu.pipeline_mode<synchronous>, transform_indices = @transform_4, window_bounds = array<i64: 64, 128>}, {transform_indices = @transform_5, window_bounds = array<i64: 1, 3, 128>}, {transform_indices = @transform_6, window_bounds = array<i64: 1, 2, 32, 128>}]} {
    %c0 = arith.constant 0 : index
    %c0_0 = arith.constant 0 : index
    %c0_1 = arith.constant 0 : index
    %0 = vector.load %arg2[%c0, %c0_0, %c0_1] : memref<2x32x256xf32, #tpu.memory_space<vmem>>, vector<2x32x256xf32>
    %1 = vector.shape_cast %0 : vector<2x32x256xf32> to vector<64x256xf32>
    %c0_2 = arith.constant 0 : index
    %c0_3 = arith.constant 0 : index
    %c0_4 = arith.constant 0 : index
    %2 = vector.load %arg7[%c0_2, %c0_3, %c0_4] : memref<1x3x128xf32, #tpu.memory_space<vmem>>, vector<1x3x128xf32>
    %3 = vector.shape_cast %2 : vector<1x3x128xf32> to vector<3x128xf32>
    %4 = vector.extract_strided_slice %3 {offsets = [0, 0], sizes = [1, 128], strides = [1, 1]} : vector<3x128xf32> to vector<1x128xf32>
    %5 = vector.extract_strided_slice %3 {offsets = [1, 0], sizes = [1, 128], strides = [1, 1]} : vector<3x128xf32> to vector<1x128xf32>
    %6 = vector.extract_strided_slice %3 {offsets = [2, 0], sizes = [1, 128], strides = [1, 1]} : vector<3x128xf32> to vector<1x128xf32>
    %c0_5 = arith.constant 0 : index
    %c0_6 = arith.constant 0 : index
    %c0_7 = arith.constant 0 : index
    %7 = vector.load %arg4[%c0_5, %c0_6, %c0_7] : memref<1x256x128xf32, #tpu.memory_space<vmem>>, vector<1x256x128xf32>
    %8 = vector.shape_cast %7 : vector<1x256x128xf32> to vector<256x128xf32>
    %cst = arith.constant dense<0.000000e+00> : vector<64x128xf32>
    %9 = tpu.matmul %1, %8, %cst {dimension_numbers = #tpu.dot_dimension_numbers<[1], [0], [0], [1], [0, 0, 1, 1], [], []>} : vector<64x256xf32>, vector<256x128xf32>, vector<64x128xf32> -> vector<64x128xf32>
    %10 = vector.broadcast %4 : vector<1x128xf32> to vector<64x128xf32>
    %11 = arith.addf %9, %10 : vector<64x128xf32>
    %cst_8 = arith.constant 0.000000e+00 : f32
    %12 = vector.broadcast %cst_8 : f32 to vector<64x128xf32>
    %13 = arith.maximumf %11, %12 : vector<64x128xf32>
    %14 = vector.shape_cast %13 : vector<64x128xf32> to vector<2x32x128xf32>
    %cst_9 = arith.constant 0.000000e+00 : f32
    %15 = vector.broadcast %cst_9 : f32 to vector<2x1x128xf32>
    %16 = tpu.concatenate %15, %14, %15 in 1 : vector<2x1x128xf32>, vector<2x32x128xf32>, vector<2x1x128xf32> -> vector<2x34x128xf32>
    %17 = vector.extract_strided_slice %16 {offsets = [0, 0, 0], sizes = [2, 32, 128], strides = [1, 1, 1]} : vector<2x34x128xf32> to vector<2x32x128xf32>
    %18 = vector.extract_strided_slice %16 {offsets = [0, 1, 0], sizes = [2, 32, 128], strides = [1, 1, 1]} : vector<2x34x128xf32> to vector<2x32x128xf32>
    %19 = vector.extract_strided_slice %16 {offsets = [0, 2, 0], sizes = [2, 32, 128], strides = [1, 1, 1]} : vector<2x34x128xf32> to vector<2x32x128xf32>
    %20 = tpu.concatenate %17, %18, %19 in 2 : vector<2x32x128xf32>, vector<2x32x128xf32>, vector<2x32x128xf32> -> vector<2x32x384xf32>
    %21 = vector.shape_cast %20 : vector<2x32x384xf32> to vector<64x384xf32>
    %c0_10 = arith.constant 0 : index
    %c0_11 = arith.constant 0 : index
    %22 = vector.load %arg5[%c0_10, %c0_11] : memref<384x128xf32, #tpu.memory_space<vmem>>, vector<384x128xf32>
    %cst_12 = arith.constant dense<0.000000e+00> : vector<64x128xf32>
    %23 = tpu.matmul %21, %22, %cst_12 {dimension_numbers = #tpu.dot_dimension_numbers<[1], [0], [0], [1], [0, 0, 1, 1], [], []>} : vector<64x384xf32>, vector<384x128xf32>, vector<64x128xf32> -> vector<64x128xf32>
    %24 = vector.broadcast %5 : vector<1x128xf32> to vector<64x128xf32>
    %25 = arith.addf %23, %24 : vector<64x128xf32>
    %c0_13 = arith.constant 0 : index
    %c0_14 = arith.constant 0 : index
    %c0_15 = arith.constant 0 : index
    %c0_16 = arith.constant 0 : index
    %26 = vector.load %arg3[%c0_13, %c0_14, %c0_15, %c0_16] : memref<1x2x32x64xf32, #tpu.memory_space<vmem>>, vector<1x2x32x64xf32>
    %27 = vector.shape_cast %26 : vector<1x2x32x64xf32> to vector<2x32x64xf32>
    %28 = vector.shape_cast %27 : vector<2x32x64xf32> to vector<64x64xf32>
    %c0_17 = arith.constant 0 : index
    %c0_18 = arith.constant 0 : index
    %29 = vector.load %arg6[%c0_17, %c0_18] : memref<64x128xf32, #tpu.memory_space<vmem>>, vector<64x128xf32>
    %cst_19 = arith.constant dense<0.000000e+00> : vector<64x128xf32>
    %30 = tpu.matmul %28, %29, %cst_19 {dimension_numbers = #tpu.dot_dimension_numbers<[1], [0], [0], [1], [0, 0, 1, 1], [], []>} : vector<64x64xf32>, vector<64x128xf32>, vector<64x128xf32> -> vector<64x128xf32>
    %31 = vector.broadcast %6 : vector<1x128xf32> to vector<64x128xf32>
    %32 = arith.addf %30, %31 : vector<64x128xf32>
    %33 = arith.addf %25, %32 : vector<64x128xf32>
    %cst_20 = arith.constant 0.000000e+00 : f32
    %34 = vector.broadcast %cst_20 : f32 to vector<64x128xf32>
    %35 = arith.maximumf %33, %34 : vector<64x128xf32>
    %36 = vector.shape_cast %35 : vector<64x128xf32> to vector<1x2x32x128xf32>
    %c0_21 = arith.constant 0 : index
    %c0_22 = arith.constant 0 : index
    %c0_23 = arith.constant 0 : index
    %c0_24 = arith.constant 0 : index
    %37 = vector.load %arg8[%c0_21, %c0_22, %c0_23, %c0_24] : memref<1x2x32x128xf32, #tpu.memory_space<vmem>>, vector<1x2x32x128xf32>
    tpu.vector_store %arg8[%c0_21, %c0_22, %c0_23, %c0_24], %36 {strides = array<i32>} : memref<1x2x32x128xf32, #tpu.memory_space<vmem>>, vector<1x2x32x128xf32>,
    return
  }
  func.func @transform_0(%arg0: i32, %arg1: i32) -> (i32, i32, i32) {
    %c0_i32 = arith.constant 0 : i32
    %c0_i32_0 = arith.constant 0 : i32
    %c0_i32_1 = arith.constant 0 : i32
    return %arg0, %c0_i32, %c0_i32_0 : i32, i32, i32
  }
  func.func @transform_1(%arg0: i32, %arg1: i32) -> (i32, i32, i32, i32) {
    %c0_i32 = arith.constant 0 : i32
    %c0_i32_0 = arith.constant 0 : i32
    %c0_i32_1 = arith.constant 0 : i32
    return %arg1, %arg0, %c0_i32, %c0_i32_0 : i32, i32, i32, i32
  }
  func.func @transform_2(%arg0: i32, %arg1: i32) -> (i32, i32, i32) {
    %c0_i32 = arith.constant 0 : i32
    %c0_i32_0 = arith.constant 0 : i32
    %c0_i32_1 = arith.constant 0 : i32
    return %arg1, %c0_i32, %c0_i32_0 : i32, i32, i32
  }
  func.func @transform_3(%arg0: i32, %arg1: i32) -> (i32, i32) {
    %c0_i32 = arith.constant 0 : i32
    %c0_i32_0 = arith.constant 0 : i32
    %c0_i32_1 = arith.constant 0 : i32
    return %c0_i32, %c0_i32_0 : i32, i32
  }
  func.func @transform_4(%arg0: i32, %arg1: i32) -> (i32, i32) {
    %c0_i32 = arith.constant 0 : i32
    %c0_i32_0 = arith.constant 0 : i32
    %c0_i32_1 = arith.constant 0 : i32
    return %c0_i32, %c0_i32_0 : i32, i32
  }
  func.func @transform_5(%arg0: i32, %arg1: i32) -> (i32, i32, i32) {
    %c0_i32 = arith.constant 0 : i32
    %c0_i32_0 = arith.constant 0 : i32
    %c0_i32_1 = arith.constant 0 : i32
    return %arg1, %c0_i32, %c0_i32_0 : i32, i32, i32
  }
  func.func @transform_6(%arg0: i32, %arg1: i32) -> (i32, i32, i32, i32) {
    %c0_i32 = arith.constant 0 : i32
    %c0_i32_0 = arith.constant 0 : i32
    %c0_i32_1 = arith.constant 0 : i32
    return %arg1, %arg0, %c0_i32, %c0_i32_0 : i32, i32, i32, i32
  }
}

</mosaic_0001>

<llo_original>
// kernel: tpu_custom_call.1
$region0: #{tpu_custom_call.1}
  #allocation0 [shape = 'u32[]', space=smem, size = 0x4, offset = 0x4, fixed_abs, tag = 'smem constant byte address 0x4 - core index']
  #allocation1 [shape = 'u32[144,128]{1,0:T(1,128)}', space=vmem, size = 0x12000, scoped, tag = 'internal scratch']
  %s0 = inlined_call_operand.hbm [shape: f32[4,32,256], index: 0, kind: input, shape index: {}]
  %s1 = inlined_call_operand.hbm [shape: f32[4,4,32,64], index: 1, kind: input, shape index: {}]
  %s2 = inlined_call_operand.hbm [shape: f32[4,256,128], index: 2, kind: input, shape index: {}]
  %s3 = inlined_call_operand.hbm [shape: f32[384,128], index: 3, kind: input, shape index: {}]
  %s4 = inlined_call_operand.hbm [shape: f32[64,128], index: 4, kind: input, shape index: {}]
  %s5 = inlined_call_operand.vmem [shape: f32[4,3,128], index: 5, kind: input, shape index: {}]
  %s6 = inlined_call_operand.hbm [shape: f32[4,4,32,128], index: 6, kind: output, shape index: {}]
  %s7 = sld [smem:[#allocation0]]
  $region77: #{tpu_custom_call.1} parent=0
    _
  %s9 = ssub.s32 1, %s7
  %s10 = scalar_select 0, %s9, %s7
  $region1: #{tpu_custom_call.1} parent=0
    #allocation2 [shape = 'u8[131072]{0}', space=vmem, size = 0x20000, scoped, tag = 'input window, operand 0']
    #allocation3 [shape = 's32[2]{0}', space=sflag, size = 0x8, scoped, tag = 'scoped memory for tpu_custom_call.1']
    #allocation4 [shape = 's32[2]{0}', space=sflag, size = 0x8, scoped, tag = 'scoped memory for tpu_custom_call.1']
    #allocation5 [shape = 'u8[65536]{0}', space=vmem, size = 0x10000, scoped, tag = 'input window, operand 1']
    #allocation6 [shape = 's32[2]{0}', space=sflag, size = 0x8, scoped, tag = 'scoped memory for tpu_custom_call.1']
    #allocation7 [shape = 'u8[262144]{0}', space=vmem, size = 0x40000, scoped, tag = 'input window, operand 2']
    #allocation8 [shape = 'u8[196608]{0}', space=vmem, size = 0x30000, scoped, tag = 'input window, operand 3, single buffered']
    #allocation9 [shape = 's32[1]{0}', space=sflag, size = 0x4, scoped, tag = 'scoped memory for tpu_custom_call.1']
    #allocation10 [shape = 'u8[32768]{0}', space=vmem, size = 0x8000, scoped, tag = 'input window, operand 4, single buffered']
    #allocation11 [shape = 'u8[65536]{0}', space=vmem, size = 0x10000, scoped, tag = 'output window, operand 0']
    %11 = vsyncpa [#allocation3], 0
    %s12 = scalar_lea.sflag [#allocation3], 1
    %13 = vsyncpa %s12, 0
    %14 = vsyncpa [#allocation6], 0
    %s15 = scalar_lea.sflag [#allocation6], 1
    %16 = vsyncpa %s15, 0
    %17 = vsyncpa [#allocation9], 0
    %18 = vsyncpa [#allocation4], 0
    %s19 = scalar_lea.sflag [#allocation4], 1
    %20 = vsyncpa %s19, 0
    loop: start=0, step=1, limit=10
    $region2: #{tpu_custom_call.1} parent=1 // loop_pre_header
      _
    $region3: #{tpu_custom_call.1} parent=1 // loop_header
      %s22 = sphi 0, %s26
      %p23 = scmp.ge.s32.totalorder %s22, 10
      %s29 = sphi 0, %s41
      %s30 = sphi 0, %s37
      %s31 = sphi 0, %s29
      %s32 = sphi 0, %s30
      %s33 = sphi 0, %s31
      %s34 = sphi 0, %s32
      %s44 = sphi 0, %s46
      %s47 = sphi 0, %s44
      %s48 = sphi 0, %s47
      %s64 = sphi 0, %s48
      %s72 = sphi 0, %s74
      %s75 = sphi 0, %s72
      %s76 = sphi 0, %s75
      %s92 = sphi 0, %s76
      %s98 = sphi 0, %s100
      %s101 = sphi 0, %s98
      %s102 = sphi 0, %s101
      %s118 = sphi 0, %s102
      %s122 = sphi 0, %s122
      %s124 = sphi 0, %s122
      %s125 = sphi 0, %s124
      %s139 = sphi 0, %s125
      %s143 = sphi 0, %s143
      %s145 = sphi 0, %s143
      %s146 = sphi 0, %s145
      %s160 = sphi 0, %s146
      %s166 = sphi 0, %s168
      %s169 = sphi 0, %s166
      %s170 = sphi 0, %s169
      %s186 = sphi 0, %s170
      %s194 = sphi 0, %s196
      %s197 = sphi 0, %s194
      %s198 = sphi 0, %s197
      %s214 = sphi 0, %s198
    $region4: #{tpu_custom_call.1} parent=1 // loop_header_branch
      %25 = sbr.rel (%p23) target = $region8
    $region5: #{tpu_custom_call.1} parent=1 // loop_body
      %s27 = ssub.s32 %s22, 1
      %s28 = ssub.s32 %s22, 2
      %s35 = sadd.s32 1, %s30
      %p36 = scmp.ge.s32.totalorder %s35, 4
      %s37 = scalar_select %p36, 0, %s35
      %s38 = sadd.s32 1, %s29
      %s39 = scalar_select %p36, %s38, %s29
      %p40 = scmp.ge.s32.totalorder %s39, 2
      %s41 = scalar_select %p40, 0, %s39
      %s42 = ssub.s32 %s29, %s41
      %p43 = scmp.eq.s32.totalorder %s42, 0
      %s45 = sadd.s32 %s44, 1
      %s46 = scalar_select %p43, %s44, %s45
      %p49 = pneg %p43
      %p50 = scmp.eq.s32.totalorder %s22, 7
      %p51 = por %p49, %p50
      %p52 = scmp.ne.s32.totalorder %s44, %s47
      %p53 = scmp.eq.s32.totalorder %s22, 0
      %p54 = por %p52, %p53
      %p55 = scmp.ne.s32.totalorder %s44, %s47
      %p56 = scmp.eq.s32.totalorder %s27, 7
      %p57 = por %p55, %p56
      %p58 = scmp.ne.s32.totalorder %s47, %s48
      %p59 = scmp.eq.s32.totalorder %s27, 0
      %p60 = por %p58, %p59
      %p61 = scmp.ne.s32.totalorder %s47, %s48
      %p62 = scmp.eq.s32.totalorder %s28, 7
      %p63 = por %p61, %p62
      %p65 = scmp.ne.s32.totalorder %s48, %s64
      %p66 = scmp.eq.s32.totalorder %s28, 0
      %p67 = por %p65, %p66
      %s68 = ssub.s32 %s30, %s37
      %s69 = ssub.s32 %s29, %s41
      %s70 = sor.u32 %s68, %s69
      %p71 = scmp.eq.s32.totalorder %s70, 0
      %s73 = sadd.s32 %s72, 1
      %s74 = scalar_select %p71, %s72, %s73
      %p77 = pneg %p71
      %p78 = scmp.eq.s32.totalorder %s22, 7
      %p79 = por %p77, %p78
      %p80 = scmp.ne.s32.totalorder %s72, %s75
      %p81 = scmp.eq.s32.totalorder %s22, 0
      %p82 = por %p80, %p81
      %p83 = scmp.ne.s32.totalorder %s72, %s75
      %p84 = scmp.eq.s32.totalorder %s27, 7
      %p85 = por %p83, %p84
      %p86 = scmp.ne.s32.totalorder %s75, %s76
      %p87 = scmp.eq.s32.totalorder %s27, 0
      %p88 = por %p86, %p87
      %p89 = scmp.ne.s32.totalorder %s75, %s76
      %p90 = scmp.eq.s32.totalorder %s28, 7
      %p91 = por %p89, %p90
      %p93 = scmp.ne.s32.totalorder %s76, %s92
      %p94 = scmp.eq.s32.totalorder %s28, 0
      %p95 = por %p93, %p94
      %s96 = ssub.s32 %s30, %s37
      %p97 = scmp.eq.s32.totalorder %s96, 0
      %s99 = sadd.s32 %s98, 1
      %s100 = scalar_select %p97, %s98, %s99
      %p103 = pneg %p97
      %p104 = scmp.eq.s32.totalorder %s22, 7
      %p105 = por %p103, %p104
      %p106 = scmp.ne.s32.totalorder %s98, %s101
      %p107 = scmp.eq.s32.totalorder %s22, 0
      %p108 = por %p106, %p107
      %p109 = scmp.ne.s32.totalorder %s98, %s101
      %p110 = scmp.eq.s32.totalorder %s27, 7
      %p111 = por %p109, %p110
      %p112 = scmp.ne.s32.totalorder %s101, %s102
      %p113 = scmp.eq.s32.totalorder %s27, 0
      %p114 = por %p112, %p113
      %p115 = scmp.ne.s32.totalorder %s101, %s102
      %p116 = scmp.eq.s32.totalorder %s28, 7
      %p117 = por %p115, %p116
      %p119 = scmp.ne.s32.totalorder %s102, %s118
      %p120 = scmp.eq.s32.totalorder %s28, 0
      %p121 = por %p119, %p120
      %s123 = sadd.s32 %s122, 1
      %p126 = scmp.eq.s32.totalorder %s22, 7
      %p127 = scmp.ne.s32.totalorder %s122, %s124
      %p128 = scmp.eq.s32.totalorder %s22, 0
      %p129 = por %p127, %p128
      %p130 = scmp.ne.s32.totalorder %s122, %s124
      %p131 = scmp.eq.s32.totalorder %s27, 7
      %p132 = por %p130, %p131
      %p133 = scmp.ne.s32.totalorder %s124, %s125
      %p134 = scmp.eq.s32.totalorder %s27, 0
      %p135 = por %p133, %p134
      %p136 = scmp.ne.s32.totalorder %s124, %s125
      %p137 = scmp.eq.s32.totalorder %s28, 7
      %p138 = por %p136, %p137
      %p140 = scmp.ne.s32.totalorder %s125, %s139
      %p141 = scmp.eq.s32.totalorder %s28, 0
      %p142 = por %p140, %p141
      %s144 = sadd.s32 %s143, 1
      %p147 = scmp.eq.s32.totalorder %s22, 7
      %p148 = scmp.ne.s32.totalorder %s143, %s145
      %p149 = scmp.eq.s32.totalorder %s22, 0
      %p150 = por %p148, %p149
      %p151 = scmp.ne.s32.totalorder %s143, %s145
      %p152 = scmp.eq.s32.totalorder %s27, 7
      %p153 = por %p151, %p152
      %p154 = scmp.ne.s32.totalorder %s145, %s146
      %p155 = scmp.eq.s32.totalorder %s27, 0
      %p156 = por %p154, %p155
      %p157 = scmp.ne.s32.totalorder %s145, %s146
      %p158 = scmp.eq.s32.totalorder %s28, 7
      %p159 = por %p157, %p158
      %p161 = scmp.ne.s32.totalorder %s146, %s160
      %p162 = scmp.eq.s32.totalorder %s28, 0
      %p163 = por %p161, %p162
      %s164 = ssub.s32 %s30, %s37
      %p165 = scmp.eq.s32.totalorder %s164, 0
      %s167 = sadd.s32 %s166, 1
      %s168 = scalar_select %p165, %s166, %s167
      %p171 = pneg %p165
      %p172 = scmp.eq.s32.totalorder %s22, 7
      %p173 = por %p171, %p172
      %p174 = scmp.ne.s32.totalorder %s166, %s169
      %p175 = scmp.eq.s32.totalorder %s22, 0
      %p176 = por %p174, %p175
      %p177 = scmp.ne.s32.totalorder %s166, %s169
      %p178 = scmp.eq.s32.totalorder %s27, 7
      %p179 = por %p177, %p178
      %p180 = scmp.ne.s32.totalorder %s169, %s170
      %p181 = scmp.eq.s32.totalorder %s27, 0
      %p182 = por %p180, %p181
      %p183 = scmp.ne.s32.totalorder %s169, %s170
      %p184 = scmp.eq.s32.totalorder %s28, 7
      %p185 = por %p183, %p184
      %p187 = scmp.ne.s32.totalorder %s170, %s186
      %p188 = scmp.eq.s32.totalorder %s28, 0
      %p189 = por %p187, %p188
      %s190 = ssub.s32 %s30, %s37
      %s191 = ssub.s32 %s29, %s41
      %s192 = sor.u32 %s190, %s191
      %p193 = scmp.eq.s32.totalorder %s192, 0
      %s195 = sadd.s32 %s194, 1
      %s196 = scalar_select %p193, %s194, %s195
      %p199 = pneg %p193
      %p200 = scmp.eq.s32.totalorder %s22, 7
      %p201 = por %p199, %p200
      %p202 = scmp.ne.s32.totalorder %s194, %s197
      %p203 = scmp.eq.s32.totalorder %s22, 0
      %p204 = por %p202, %p203
      %p205 = scmp.ne.s32.totalorder %s194, %s197
      %p206 = scmp.eq.s32.totalorder %s27, 7
      %p207 = por %p205, %p206
      %p208 = scmp.ne.s32.totalorder %s197, %s198
      %p209 = scmp.eq.s32.totalorder %s27, 0
      %p210 = por %p208, %p209
      %p211 = scmp.ne.s32.totalorder %s197, %s198
      %p212 = scmp.eq.s32.totalorder %s28, 7
      %p213 = por %p211, %p212
      %p215 = scmp.ne.s32.totalorder %s198, %s214
      %p216 = scmp.eq.s32.totalorder %s28, 0
      %p217 = por %p215, %p216
      %p218 = scmp.le.s32.totalorder 1, %s22
      %p219 = scmp.lt.s32.totalorder %s22, 9
      %p220 = pnand %p218, %p219
      %p221 = pneg %p220
      // Predicated region
      $region9: #{tpu_custom_call.1} parent=5 // pred_check
        _
      $region10: #{tpu_custom_call.1} parent=5 // pred_check_branch
        %223 = sbr.rel (%p220) target = $region12
      $region11: #{tpu_custom_call.1} parent=5 // pred_region
        %s224 = ssub.s32 %s22, 1
        // Predicated region
        $region13: #{tpu_custom_call.1} parent=11 // pred_check
          %p225 = pneg %p135
        $region14: #{tpu_custom_call.1} parent=11 // pred_check_branch
          %227 = sbr.rel (%p225) target = $region16
        $region15: #{tpu_custom_call.1} parent=11 // pred_region
          %s229 = ssub.s32 6144, 6144
          %230 = vsyncadd [#allocation9], %s229
          %s231 = sshll.u32 [#allocation8], 4
          %s232 = int_to_ptr.vmem [resolvable:$true] %s231
          %237 = dma.hbm_to_vmem [thread:$0]  %s3, 6144, %s232, [#allocation9], 128, 128, 8
        $region16: #{tpu_custom_call.1} parent=11 // pred_fallthru
          _
        // Predicated region
        $region17: #{tpu_custom_call.1} parent=11 // pred_check
          %p238 = pneg %p156
        $region18: #{tpu_custom_call.1} parent=11 // pred_check_branch
          %240 = sbr.rel (%p238) target = $region20
        $region19: #{tpu_custom_call.1} parent=11 // pred_region
          %s242 = ssub.s32 1024, 1024
          %243 = vsyncadd [#allocation9], %s242
          %s244 = sshll.u32 [#allocation10], 4
          %s245 = int_to_ptr.vmem [resolvable:$true] %s244
          %250 = dma.hbm_to_vmem [thread:$0]  %s4, 1024, %s245, [#allocation9], 128, 128, 8
        $region20: #{tpu_custom_call.1} parent=11 // pred_fallthru
          _
      $region12: #{tpu_custom_call.1} parent=5 // pred_fallthru
        _
      %p251 = scmp.lt.s32.totalorder %s22, 8
      // Predicated region
      $region21: #{tpu_custom_call.1} parent=5 // pred_check
        %p252 = pneg %p251
      $region22: #{tpu_custom_call.1} parent=5 // pred_check_branch
        %254 = sbr.rel (%p252) target = $region24
      $region23: #{tpu_custom_call.1} parent=5 // pred_region
        // Predicated region
        $region25: #{tpu_custom_call.1} parent=23 // pred_check
          %p255 = pneg %p54
        $region26: #{tpu_custom_call.1} parent=23 // pred_check_branch
          %257 = sbr.rel (%p255) target = $region28
        $region27: #{tpu_custom_call.1} parent=23 // pred_region
          %s258 = sand.u32 %s44, 1
          %s259 = scalar_lea.sflag [#allocation3], %s258
          %s260 = sand.u32 %s44, 1
          %s261 = smul.addr %s260, 128
          %s262 = scalar_lea.vmem [#allocation2], %s261
          %s263 = smul.u32 2, %s29
          %s265 = ssub.s32 2048, 2048
          %266 = vsyncadd %s259, %s265
          %s267 = smul.addr %s263, 8
          %s268 = smul.addr %s267, 128
          %s269 = scalar_lea.hbm %s0, %s268
          %s270 = sshll.u32 %s262, 4
          %s271 = int_to_ptr.vmem [resolvable:$true] %s270
          %276 = dma.hbm_to_vmem [thread:$0]  %s269, 2048, %s271, %s259, 256, 256, 16
        $region28: #{tpu_custom_call.1} parent=23 // pred_fallthru
          _
        // Predicated region
        $region29: #{tpu_custom_call.1} parent=23 // pred_check
          %p277 = pneg %p82
        $region30: #{tpu_custom_call.1} parent=23 // pred_check_branch
          %279 = sbr.rel (%p277) target = $region32
        $region31: #{tpu_custom_call.1} parent=23 // pred_region
          %s280 = sand.u32 %s22, 1
          %s281 = scalar_lea.sflag [#allocation6], %s280
          %s282 = sand.u32 %s72, 1
          %s283 = smul.addr %s282, 64
          %s284 = scalar_lea.vmem [#allocation5], %s283
          %s285 = smul.u32 2, %s29
          %s287 = ssub.s32 1024, 1024
          %288 = vsyncadd %s281, %s287
          %s289 = smul.addr %s285, 4
          %s290 = smul.addr %s30, 16
          %s291 = sadd.s32 %s289, %s290
          %s292 = smul.addr %s291, 128
          %s293 = scalar_lea.hbm %s1, %s292
          %s294 = sshll.u32 %s284, 4
          %s295 = int_to_ptr.vmem [resolvable:$true] %s294
          %300 = dma.hbm_to_vmem [thread:$0]  %s293, 1024, %s295, %s281, 128, 128, 8
        $region32: #{tpu_custom_call.1} parent=23 // pred_fallthru
          _
        // Predicated region
        $region33: #{tpu_custom_call.1} parent=23 // pred_check
          %p301 = pneg %p108
        $region34: #{tpu_custom_call.1} parent=23 // pred_check_branch
          %303 = sbr.rel (%p301) target = $region36
        $region35: #{tpu_custom_call.1} parent=23 // pred_region
          %s304 = sand.u32 %s22, 1
          %s305 = scalar_lea.sflag [#allocation6], %s304
          %s306 = sand.u32 %s98, 1
          %s307 = smul.addr %s306, 256
          %s308 = scalar_lea.vmem [#allocation7], %s307
          %s310 = ssub.s32 4096, 4096
          %311 = vsyncadd %s305, %s310
          %s312 = smul.addr %s30, 32
          %s313 = smul.addr %s312, 128
          %s314 = scalar_lea.hbm %s2, %s313
          %s315 = sshll.u32 %s308, 4
          %s316 = int_to_ptr.vmem [resolvable:$true] %s315
          %321 = dma.hbm_to_vmem [thread:$0]  %s314, 4096, %s316, %s305, 128, 128, 8
        $region36: #{tpu_custom_call.1} parent=23 // pred_fallthru
          _
        // Predicated region
        $region37: #{tpu_custom_call.1} parent=23 // pred_check
          %p322 = pneg %p176
        $region38: #{tpu_custom_call.1} parent=23 // pred_check_branch
          %324 = sbr.rel (%p322) target = $region40
        $region39: #{tpu_custom_call.1} parent=23 // pred_region
          %p325 = scmp.lt.s32.totalorder %s30, 3
          %s326 = scalar_select %p325, %s30, 3
          %s327 = smul.addr %s326, 4
          %s328 = scalar_lea.vmem %s5, %s327
        $region40: #{tpu_custom_call.1} parent=23 // pred_fallthru
          _
      $region24: #{tpu_custom_call.1} parent=5 // pred_fallthru
        _
      %p329 = scmp.le.s32.totalorder 1, %s22
      %p330 = scmp.lt.s32.totalorder %s22, 9
      %p331 = pnand %p329, %p330
      %p332 = pneg %p331
      // Predicated region
      $region41: #{tpu_custom_call.1} parent=5 // pred_check
        _
      $region42: #{tpu_custom_call.1} parent=5 // pred_check_branch
        %334 = sbr.rel (%p331) target = $region44
      $region43: #{tpu_custom_call.1} parent=5 // pred_region
        %s335 = ssub.s32 %s22, 1
        %s336 = sand.u32 %s47, 1
        %s337 = scalar_lea.sflag [#allocation3], %s336
        %s338 = sand.u32 %s47, 1
        %s339 = smul.addr %s338, 128
        %s340 = scalar_lea.vmem [#allocation2], %s339
        // Predicated region
        $region45: #{tpu_custom_call.1} parent=43 // pred_check
          %p341 = pneg %p60
        $region46: #{tpu_custom_call.1} parent=43 // pred_check_branch
          %343 = sbr.rel (%p341) target = $region48
        $region47: #{tpu_custom_call.1} parent=43 // pred_region
          %344 = dma.done %s337, 2048
        $region48: #{tpu_custom_call.1} parent=43 // pred_fallthru
          _
        %s345 = sand.u32 %s27, 1
        %s346 = scalar_lea.sflag [#allocation6], %s345
        %s347 = sand.u32 %s75, 1
        %s348 = smul.addr %s347, 64
        %s349 = scalar_lea.vmem [#allocation5], %s348
        // Predicated region
        $region49: #{tpu_custom_call.1} parent=43 // pred_check
          %p350 = pneg %p88
        $region50: #{tpu_custom_call.1} parent=43 // pred_check_branch
          %352 = sbr.rel (%p350) target = $region52
        $region51: #{tpu_custom_call.1} parent=43 // pred_region
          %353 = dma.done %s346, 1024
        $region52: #{tpu_custom_call.1} parent=43 // pred_fallthru
          _
        %s354 = sand.u32 %s27, 1
        %s355 = scalar_lea.sflag [#allocation6], %s354
        %s356 = sand.u32 %s101, 1
        %s357 = smul.addr %s356, 256
        %s358 = scalar_lea.vmem [#allocation7], %s357
        // Predicated region
        $region53: #{tpu_custom_call.1} parent=43 // pred_check
          %p359 = pneg %p114
        $region54: #{tpu_custom_call.1} parent=43 // pred_check_branch
          %361 = sbr.rel (%p359) target = $region56
        $region55: #{tpu_custom_call.1} parent=43 // pred_region
          %362 = dma.done %s355, 4096
        $region56: #{tpu_custom_call.1} parent=43 // pred_fallthru
          _
        // Predicated region
        $region57: #{tpu_custom_call.1} parent=43 // pred_check
          %p363 = pneg %p135
        $region58: #{tpu_custom_call.1} parent=43 // pred_check_branch
          %365 = sbr.rel (%p363) target = $region60
        $region59: #{tpu_custom_call.1} parent=43 // pred_region
          %366 = dma.done [#allocation9], 6144
        $region60: #{tpu_custom_call.1} parent=43 // pred_fallthru
          _
        // Predicated region
        $region61: #{tpu_custom_call.1} parent=43 // pred_check
          %p367 = pneg %p156
        $region62: #{tpu_custom_call.1} parent=43 // pred_check_branch
          %369 = sbr.rel (%p367) target = $region64
        $region63: #{tpu_custom_call.1} parent=43 // pred_region
          %370 = dma.done [#allocation9], 1024
        $region64: #{tpu_custom_call.1} parent=43 // pred_fallthru
          _
        %s371 = sand.u32 %s47, 1
        %s372 = scalar_lea.sflag [#allocation3], %s371
        %s373 = sand.u32 %s47, 1
        %s374 = smul.addr %s373, 128
        %s375 = scalar_lea.vmem [#allocation2], %s374
        %p376 = pneg %p60
        %p377 = pneg %p57
        %s378 = sand.u32 %s27, 1
        %s379 = scalar_lea.sflag [#allocation6], %s378
        %s380 = sand.u32 %s75, 1
        %s381 = smul.addr %s380, 64
        %s382 = scalar_lea.vmem [#allocation5], %s381
        %p383 = pneg %p88
        %p384 = pneg %p85
        %s385 = sand.u32 %s27, 1
        %s386 = scalar_lea.sflag [#allocation6], %s385
        %s387 = sand.u32 %s101, 1
        %s388 = smul.addr %s387, 256
        %s389 = scalar_lea.vmem [#allocation7], %s388
        %p390 = pneg %p114
        %p391 = pneg %p111
        %p392 = pneg %p135
        %p393 = pneg %p132
        %p394 = pneg %p156
        %p395 = pneg %p153
        %p396 = scmp.lt.s32.totalorder %s32, 3
        %s397 = scalar_select %p396, %s32, 3
        %s398 = smul.addr %s397, 4
        %s399 = scalar_lea.vmem %s5, %s398
        %p400 = pneg %p182
        %p401 = pneg %p179
        %p402 = pneg %p210
        %p403 = pneg %p207
        %s404 = sand.u32 %s197, 1
        %s405 = scalar_lea.sflag [#allocation4], %s404
        %s406 = sand.u32 %s197, 1
        %s407 = smul.addr %s406, 64
        %s408 = scalar_lea.vmem [#allocation11], %s407
        %s409 = smul.u32 2, %s31
        %s410 = smul.u32 2, %s31
        %p411 = scmp.lt.s32.totalorder %s32, 3
        %s412 = scalar_select %p411, %s32, 3
        %s413 = smul.addr %s412, 4
        %s414 = scalar_lea.vmem %s5, %s413
        %s415 = smul.u32 2, %s31
        %v416 = vld [vmem:[%s340] sm:$0xff]
        %v417 = vld [vmem:[%s340 + $0x8] sm:$0xff]
        %v418 = vld [vmem:[%s340 + $0x10] sm:$0xff]
        %v419 = vld [vmem:[%s340 + $0x18] sm:$0xff]
        %v420 = vld [vmem:[%s340 + $0x20] sm:$0xff]
        %v421 = vld [vmem:[%s340 + $0x28] sm:$0xff]
        %v422 = vld [vmem:[%s340 + $0x30] sm:$0xff]
        %v423 = vld [vmem:[%s340 + $0x38] sm:$0xff]
        %v424 = vld [vmem:[%s340 + $0x40] sm:$0xff]
        %v425 = vld [vmem:[%s340 + $0x48] sm:$0xff]
        %v426 = vld [vmem:[%s340 + $0x50] sm:$0xff]
        %v427 = vld [vmem:[%s340 + $0x58] sm:$0xff]
        %v428 = vld [vmem:[%s340 + $0x60] sm:$0xff]
        %v429 = vld [vmem:[%s340 + $0x68] sm:$0xff]
        %v430 = vld [vmem:[%s340 + $0x70] sm:$0xff]
        %v431 = vld [vmem:[%s340 + $0x78] sm:$0xff]
        %v432 = vld [vmem:[%s414] sm:$0x7]
        %v433 = vld [vmem:[%s358] sm:$0xff]
        %v434 = vld [vmem:[%s358 + $0x8] sm:$0xff]
        %v435 = vld [vmem:[%s358 + $0x10] sm:$0xff]
        %v436 = vld [vmem:[%s358 + $0x18] sm:$0xff]
        %v437 = vld [vmem:[%s358 + $0x20] sm:$0xff]
        %v438 = vld [vmem:[%s358 + $0x28] sm:$0xff]
        %v439 = vld [vmem:[%s358 + $0x30] sm:$0xff]
        %v440 = vld [vmem:[%s358 + $0x38] sm:$0xff]
        %v441 = vld [vmem:[%s358 + $0x40] sm:$0xff]
        %v442 = vld [vmem:[%s358 + $0x48] sm:$0xff]
        %v443 = vld [vmem:[%s358 + $0x50] sm:$0xff]
        %v444 = vld [vmem:[%s358 + $0x58] sm:$0xff]
        %v445 = vld [vmem:[%s358 + $0x60] sm:$0xff]
        %v446 = vld [vmem:[%s358 + $0x68] sm:$0xff]
        %v447 = vld [vmem:[%s358 + $0x70] sm:$0xff]
        %v448 = vld [vmem:[%s358 + $0x78] sm:$0xff]
        %v449 = vld [vmem:[%s358 + $0x80] sm:$0xff]
        %v450 = vld [vmem:[%s358 + $0x88] sm:$0xff]
        %v451 = vld [vmem:[%s358 + $0x90] sm:$0xff]
        %v452 = vld [vmem:[%s358 + $0x98] sm:$0xff]
        %v453 = vld [vmem:[%s358 + $0xa0] sm:$0xff]
        %v454 = vld [vmem:[%s358 + $0xa8] sm:$0xff]
        %v455 = vld [vmem:[%s358 + $0xb0] sm:$0xff]
        %v456 = vld [vmem:[%s358 + $0xb8] sm:$0xff]
        %v457 = vld [vmem:[%s358 + $0xc0] sm:$0xff]
        %v458 = vld [vmem:[%s358 + $0xc8] sm:$0xff]
        %v459 = vld [vmem:[%s358 + $0xd0] sm:$0xff]
        %v460 = vld [vmem:[%s358 + $0xd8] sm:$0xff]
        %v461 = vld [vmem:[%s358 + $0xe0] sm:$0xff]
        %v462 = vld [vmem:[%s358 + $0xe8] sm:$0xff]
        %v463 = vld [vmem:[%s358 + $0xf0] sm:$0xff]
        %v464 = vld [vmem:[%s358 + $0xf8] sm:$0xff]
        %v465 = vlaneseq
        %v466 = vshrl.u32 %v465, 7
        %v467 = vsub.s32 0, %v466
        %v468 = vrot.slane %v432, %v467
        %469 = vmatprep.subr.mxu0 0.0
        %470 = vmatpush1.msra.mxu0 %v433
        %471 = vmatprep.subr.mxu0 0.0
        %472 = vmatpush1.msra.mxu0 %v434
        %473 = vmatprep.subr.mxu0 0.0
        %474 = vmatpush1.msra.mxu0 %v435
        %475 = vmatprep.subr.mxu0 0.0
        %476 = vmatpush1.msra.mxu0 %v436
        %477 = vmatprep.subr.mxu0 0.0
        %478 = vmatpush1.msra.mxu0 %v437
        %479 = vmatprep.subr.mxu0 0.0
        %480 = vmatpush1.msra.mxu0 %v438
        %481 = vmatprep.subr.mxu0 0.0
        %482 = vmatpush1.msra.mxu0 %v439
        %483 = vmatprep.subr.mxu0 0.0
        %484 = vmatpush1.msra.mxu0 %v440
        %485 = vmatprep.subr.mxu0 0.0
        %486 = vmatpush1.msra.mxu0 %v441
        %487 = vmatprep.subr.mxu0 0.0
        %488 = vmatpush1.msra.mxu0 %v442
        %489 = vmatprep.subr.mxu0 0.0
        %490 = vmatpush1.msra.mxu0 %v443
        %491 = vmatprep.subr.mxu0 0.0
        %492 = vmatpush1.msra.mxu0 %v444
        %493 = vmatprep.subr.mxu0 0.0
        %494 = vmatpush1.msra.mxu0 %v445
        %495 = vmatprep.subr.mxu0 0.0
        %496 = vmatpush1.msra.mxu0 %v446
        %497 = vmatprep.subr.mxu0 0.0
        %498 = vmatpush1.msra.mxu0 %v447
        %499 = vmatprep.subr.mxu0 0.0
        %500 = vmatpush1.msra.mxu0 %v448
        %501 = vmatprep.subr.mxu0 0.0
        %502 = vmatpush1.msra.mxu0 %v449
        %503 = vmatprep.subr.mxu0 0.0
        %504 = vmatpush1.msra.mxu0 %v450
        %505 = vmatprep.subr.mxu0 0.0
        %506 = vmatpush1.msra.mxu0 %v451
        %507 = vmatprep.subr.mxu0 0.0
        %508 = vmatpush1.msra.mxu0 %v452
        %509 = vmatprep.subr.mxu0 0.0
        %510 = vmatpush1.msra.mxu0 %v453
        %511 = vmatprep.subr.mxu0 0.0
        %512 = vmatpush1.msra.mxu0 %v454
        %513 = vmatprep.subr.mxu0 0.0
        %514 = vmatpush1.msra.mxu0 %v455
        %515 = vmatprep.subr.mxu0 0.0
        %516 = vmatpush1.msra.mxu0 %v456
        %517 = vmatprep.subr.mxu0 0.0
        %518 = vmatpush1.msra.mxu0 %v457
        %519 = vmatprep.subr.mxu0 0.0
        %520 = vmatpush1.msra.mxu0 %v458
        %521 = vmatprep.subr.mxu0 0.0
        %522 = vmatpush1.msra.mxu0 %v459
        %523 = vmatprep.subr.mxu0 0.0
        %524 = vmatpush1.msra.mxu0 %v460
        %525 = vmatprep.subr.mxu0 0.0
        %526 = vmatpush1.msra.mxu0 %v461
        %527 = vmatprep.subr.mxu0 0.0
        %528 = vmatpush1.msra.mxu0 %v462
        %529 = vmatprep.subr.mxu0 0.0
        %530 = vmatpush1.msra.mxu0 %v463
        %531 = vmatprep.subr.mxu0 0.0
        %532 = vmatpush1.msra.mxu0 %v464
        %533 = vmatprep.mubr.f32.mxu0 %v417
        %534 = vmatmul.mubr.f32.gmra.mrb[0].mxu0 %v416
        %v535 = vpop.f32.mrb[0].mxu0
        %v536 = vadd.f32 %v468, %v535
        %v537 = vpop.f32.mrb[0].mxu0
        %538 = vmatprep.mubr.f32.mxu0 %v419
        %539 = vmatmul.mubr.f32.gmra.mrb[0].mxu0 %v418
        %v540 = vpop.f32.mrb[0].mxu0
        %v541 = vadd.f32 %v468, %v540
        %v542 = vpop.f32.mrb[0].mxu0
        %543 = vmatprep.mubr.f32.mxu0 %v421
        %544 = vmatmul.mubr.f32.gmra.mrb[0].mxu0 %v420
        %v545 = vpop.f32.mrb[0].mxu0
        %v546 = vadd.f32 %v468, %v545
        %v547 = vpop.f32.mrb[0].mxu0
        %548 = vmatprep.mubr.f32.mxu0 %v423
        %549 = vmatmul.mubr.f32.gmra.mrb[0].mxu0 %v422
        %v550 = vpop.f32.mrb[0].mxu0
        %v551 = vadd.f32 %v468, %v550
        %v552 = vpop.f32.mrb[0].mxu0
        %553 = vmatprep.mubr.f32.mxu0 %v425
        %554 = vmatmul.mubr.f32.gmra.mrb[0].mxu0 %v424
        %v555 = vpop.f32.mrb[0].mxu0
        %v556 = vadd.f32 %v468, %v555
        %v557 = vpop.f32.mrb[0].mxu0
        %558 = vmatprep.mubr.f32.mxu0 %v427
        %559 = vmatmul.mubr.f32.gmra.mrb[0].mxu0 %v426
        %v560 = vpop.f32.mrb[0].mxu0
        %v561 = vadd.f32 %v468, %v560
        %v562 = vpop.f32.mrb[0].mxu0
        %563 = vmatprep.mubr.f32.mxu0 %v429
        %564 = vmatmul.mubr.f32.gmra.mrb[0].mxu0 %v428
        %v565 = vpop.f32.mrb[0].mxu0
        %v566 = vadd.f32 %v468, %v565
        %v567 = vpop.f32.mrb[0].mxu0
        %568 = vmatprep.mubr.f32.mxu0 %v431
        %569 = vmatmul.mubr.f32.gmra.mrb[0].mxu0 %v430
        %v570 = vpop.f32.mrb[0].mxu0
        %v571 = vadd.f32 %v468, %v570
        %v572 = vpop.f32.mrb[0].mxu0
        %573 = vdwg.mxu0
        %v574 = vmax.f32 %v536, 0.0
        %v575 = vmax.f32 %v541, 0.0
        %v576 = vmax.f32 %v546, 0.0
        %v577 = vmax.f32 %v551, 0.0
        %v578 = vmax.f32 %v556, 0.0
        %v579 = vmax.f32 %v561, 0.0
        %v580 = vmax.f32 %v566, 0.0
        %v581 = vmax.f32 %v571, 0.0
        %vm590 = vcmask 1040384
        %v591 = vrot.slane %v574, 7
        %v592 = vrot.slane %v575, 7
        %v593 = vsel %vm590, %v591, %v592
        %v594 = vrot.slane %v576, 7
        %v595 = vsel %vm590, %v592, %v594
        %v596 = vrot.slane %v577, 7
        %v597 = vsel %vm590, %v594, %v596
        %v598 = vrot.slane %v578, 7
        %v599 = vrot.slane %v579, 7
        %v600 = vsel %vm590, %v598, %v599
        %v601 = vrot.slane %v580, 7
        %v602 = vsel %vm590, %v599, %v601
        %v603 = vrot.slane %v581, 7
        %v604 = vsel %vm590, %v601, %v603
        %v615 = vsel %vm590, 0.0, %v591
        %v616 = vsel %vm590, 0.0, %v598
        %v617 = vsel %vm590, %v596, 0.0
        %v618 = vsel %vm590, %v603, 0.0
        %vm623 = vcmask 1046528
        %v624 = vrot.slane %v615, 1
        %v625 = vrot.slane %v593, 1
        %v626 = vsel %vm623, %v624, %v625
        %v627 = vrot.slane %v595, 1
        %v628 = vsel %vm623, %v625, %v627
        %v629 = vrot.slane %v597, 1
        %v630 = vsel %vm623, %v627, %v629
        %v631 = vrot.slane %v617, 1
        %v632 = vsel %vm623, %v629, %v631
        %v633 = vrot.slane %v616, 1
        %v634 = vrot.slane %v600, 1
        %v635 = vsel %vm623, %v633, %v634
        %v636 = vrot.slane %v602, 1
        %v637 = vsel %vm623, %v634, %v636
        %v638 = vrot.slane %v604, 1
        %v639 = vsel %vm623, %v636, %v638
        %v640 = vrot.slane %v618, 1
        %v641 = vsel %vm623, %v638, %v640
        %vm650 = vcmask 1045504
        %v651 = vrot.slane %v615, 2
        %v652 = vrot.slane %v593, 2
        %v653 = vsel %vm650, %v651, %v652
        %v654 = vrot.slane %v595, 2
        %v655 = vsel %vm650, %v652, %v654
        %v656 = vrot.slane %v597, 2
        %v657 = vsel %vm650, %v654, %v656
        %v658 = vrot.slane %v617, 2
        %v659 = vsel %vm650, %v656, %v658
        %v660 = vrot.slane %v616, 2
        %v661 = vrot.slane %v600, 2
        %v662 = vsel %vm650, %v660, %v661
        %v663 = vrot.slane %v602, 2
        %v664 = vsel %vm650, %v661, %v663
        %v665 = vrot.slane %v604, 2
        %v666 = vsel %vm650, %v663, %v665
        %v667 = vrot.slane %v618, 2
        %v668 = vsel %vm650, %v665, %v667
        %v677 = vld [vmem:[#allocation8] sm:$0xff]
        %v678 = vld [vmem:[#allocation8 + $0x8] sm:$0xff]
        %v679 = vld [vmem:[#allocation8 + $0x10] sm:$0xff]
        %v680 = vld [vmem:[#allocation8 + $0x18] sm:$0xff]
        %v681 = vld [vmem:[#allocation8 + $0x20] sm:$0xff]
        %v682 = vld [vmem:[#allocation8 + $0x28] sm:$0xff]
        %v683 = vld [vmem:[#allocation8 + $0x30] sm:$0xff]
        %v684 = vld [vmem:[#allocation8 + $0x38] sm:$0xff]
        %v685 = vld [vmem:[#allocation8 + $0x40] sm:$0xff]
        %v686 = vld [vmem:[#allocation8 + $0x48] sm:$0xff]
        %v687 = vld [vmem:[#allocation8 + $0x50] sm:$0xff]
        %v688 = vld [vmem:[#allocation8 + $0x58] sm:$0xff]
        %v689 = vld [vmem:[#allocation8 + $0x60] sm:$0xff]
        %v690 = vld [vmem:[#allocation8 + $0x68] sm:$0xff]
        %v691 = vld [vmem:[#allocation8 + $0x70] sm:$0xff]
        %v692 = vld [vmem:[#allocation8 + $0x78] sm:$0xff]
        %v693 = vld [vmem:[#allocation8 + $0x80] sm:$0xff]
        %v694 = vld [vmem:[#allocation8 + $0x88] sm:$0xff]
        %v695 = vld [vmem:[#allocation8 + $0x90] sm:$0xff]
        %v696 = vld [vmem:[#allocation8 + $0x98] sm:$0xff]
        %v697 = vld [vmem:[#allocation8 + $0xa0] sm:$0xff]
        %v698 = vld [vmem:[#allocation8 + $0xa8] sm:$0xff]
        %v699 = vld [vmem:[#allocation8 + $0xb0] sm:$0xff]
        %v700 = vld [vmem:[#allocation8 + $0xb8] sm:$0xff]
        %v701 = vld [vmem:[#allocation8 + $0xc0] sm:$0xff]
        %v702 = vld [vmem:[#allocation8 + $0xc8] sm:$0xff]
        %v703 = vld [vmem:[#allocation8 + $0xd0] sm:$0xff]
        %v704 = vld [vmem:[#allocation8 + $0xd8] sm:$0xff]
        %v705 = vld [vmem:[#allocation8 + $0xe0] sm:$0xff]
        %v706 = vld [vmem:[#allocation8 + $0xe8] sm:$0xff]
        %v707 = vld [vmem:[#allocation8 + $0xf0] sm:$0xff]
        %v708 = vld [vmem:[#allocation8 + $0xf8] sm:$0xff]
        %v709 = vld [vmem:[#allocation8 + $0x100] sm:$0xff]
        %v710 = vld [vmem:[#allocation8 + $0x108] sm:$0xff]
        %v711 = vld [vmem:[#allocation8 + $0x110] sm:$0xff]
        %v712 = vld [vmem:[#allocation8 + $0x118] sm:$0xff]
        %v713 = vld [vmem:[#allocation8 + $0x120] sm:$0xff]
        %v714 = vld [vmem:[#allocation8 + $0x128] sm:$0xff]
        %v715 = vld [vmem:[#allocation8 + $0x130] sm:$0xff]
        %v716 = vld [vmem:[#allocation8 + $0x138] sm:$0xff]
        %v717 = vld [vmem:[#allocation8 + $0x140] sm:$0xff]
        %v718 = vld [vmem:[#allocation8 + $0x148] sm:$0xff]
        %v719 = vld [vmem:[#allocation8 + $0x150] sm:$0xff]
        %v720 = vld [vmem:[#allocation8 + $0x158] sm:$0xff]
        %v721 = vld [vmem:[#allocation8 + $0x160] sm:$0xff]
        %v722 = vld [vmem:[#allocation8 + $0x168] sm:$0xff]
        %v723 = vld [vmem:[#allocation8 + $0x170] sm:$0xff]
        %v724 = vld [vmem:[#allocation8 + $0x178] sm:$0xff]
        %v725 = vlaneseq
        %v726 = vshrl.u32 %v725, 7
        %v727 = vsub.s32 1, %v726
        %v728 = vrot.slane %v432, %v727
        %729 = vmatprep.subr.mxu0 0.0
        %730 = vmatpush1.msra.mxu0 %v677
        %731 = vmatprep.subr.mxu0 0.0
        %732 = vmatpush1.msra.mxu0 %v678
        %733 = vmatprep.subr.mxu0 0.0
        %734 = vmatpush1.msra.mxu0 %v679
        %735 = vmatprep.subr.mxu0 0.0
        %736 = vmatpush1.msra.mxu0 %v680
        %737 = vmatprep.subr.mxu0 0.0
        %738 = vmatpush1.msra.mxu0 %v681
        %739 = vmatprep.subr.mxu0 0.0
        %740 = vmatpush1.msra.mxu0 %v682
        %741 = vmatprep.subr.mxu0 0.0
        %742 = vmatpush1.msra.mxu0 %v683
        %743 = vmatprep.subr.mxu0 0.0
        %744 = vmatpush1.msra.mxu0 %v684
        %745 = vmatprep.subr.mxu0 0.0
        %746 = vmatpush1.msra.mxu0 %v685
        %747 = vmatprep.subr.mxu0 0.0
        %748 = vmatpush1.msra.mxu0 %v686
        %749 = vmatprep.subr.mxu0 0.0
        %750 = vmatpush1.msra.mxu0 %v687
        %751 = vmatprep.subr.mxu0 0.0
        %752 = vmatpush1.msra.mxu0 %v688
        %753 = vmatprep.subr.mxu0 0.0
        %754 = vmatpush1.msra.mxu0 %v689
        %755 = vmatprep.subr.mxu0 0.0
        %756 = vmatpush1.msra.mxu0 %v690
        %757 = vmatprep.subr.mxu0 0.0
        %758 = vmatpush1.msra.mxu0 %v691
        %759 = vmatprep.subr.mxu0 0.0
        %760 = vmatpush1.msra.mxu0 %v692
        %761 = vmatprep.subr.mxu0 0.0
        %762 = vmatpush1.msra.mxu0 %v693
        %763 = vmatprep.subr.mxu0 0.0
        %764 = vmatpush1.msra.mxu0 %v694
        %765 = vmatprep.subr.mxu0 0.0
        %766 = vmatpush1.msra.mxu0 %v695
        %767 = vmatprep.subr.mxu0 0.0
        %768 = vmatpush1.msra.mxu0 %v696
        %769 = vmatprep.subr.mxu0 0.0
        %770 = vmatpush1.msra.mxu0 %v697
        %771 = vmatprep.subr.mxu0 0.0
        %772 = vmatpush1.msra.mxu0 %v698
        %773 = vmatprep.subr.mxu0 0.0
        %774 = vmatpush1.msra.mxu0 %v699
        %775 = vmatprep.subr.mxu0 0.0
        %776 = vmatpush1.msra.mxu0 %v700
        %777 = vmatprep.subr.mxu0 0.0
        %778 = vmatpush1.msra.mxu0 %v701
        %779 = vmatprep.subr.mxu0 0.0
        %780 = vmatpush1.msra.mxu0 %v702
        %781 = vmatprep.subr.mxu0 0.0
        %782 = vmatpush1.msra.mxu0 %v703
        %783 = vmatprep.subr.mxu0 0.0
        %784 = vmatpush1.msra.mxu0 %v704
        %785 = vmatprep.subr.mxu0 0.0
        %786 = vmatpush1.msra.mxu0 %v705
        %787 = vmatprep.subr.mxu0 0.0
        %788 = vmatpush1.msra.mxu0 %v706
        %789 = vmatprep.subr.mxu0 0.0
        %790 = vmatpush1.msra.mxu0 %v707
        %791 = vmatprep.subr.mxu0 0.0
        %792 = vmatpush1.msra.mxu0 %v708
        %793 = vmatprep.mubr.f32.mxu0 %v626
        %794 = vmatmul.mubr.f32.gmra.mrb[0].mxu0 %v615
        %v795 = vpop.f32.mrb[0].mxu0
        %v796 = vadd.f32 %v728, %v795
        %v797 = vpop.f32.mrb[0].mxu0
        %798 = vmatprep.mubr.f32.mxu0 %v628
        %799 = vmatmul.mubr.f32.gmra.mrb[0].mxu0 %v593
        %v800 = vpop.f32.mrb[0].mxu0
        %v801 = vadd.f32 %v728, %v800
        %v802 = vpop.f32.mrb[0].mxu0
        %803 = vmatprep.mubr.f32.mxu0 %v630
        %804 = vmatmul.mubr.f32.gmra.mrb[0].mxu0 %v595
        %v805 = vpop.f32.mrb[0].mxu0
        %v806 = vadd.f32 %v728, %v805
        %v807 = vpop.f32.mrb[0].mxu0
        %808 = vmatprep.mubr.f32.mxu0 %v632
        %809 = vmatmul.mubr.f32.gmra.mrb[0].mxu0 %v597
        %v810 = vpop.f32.mrb[0].mxu0
        %v811 = vadd.f32 %v728, %v810
        %v812 = vpop.f32.mrb[0].mxu0
        %813 = vmatprep.mubr.f32.mxu0 %v635
        %814 = vmatmul.mubr.f32.gmra.mrb[0].mxu0 %v616
        %v815 = vpop.f32.mrb[0].mxu0
        %v816 = vadd.f32 %v728, %v815
        %v817 = vpop.f32.mrb[0].mxu0
        %818 = vmatprep.mubr.f32.mxu0 %v637
        %819 = vmatmul.mubr.f32.gmra.mrb[0].mxu0 %v600
        %v820 = vpop.f32.mrb[0].mxu0
        %v821 = vadd.f32 %v728, %v820
        %v822 = vpop.f32.mrb[0].mxu0
        %823 = vmatprep.mubr.f32.mxu0 %v639
        %824 = vmatmul.mubr.f32.gmra.mrb[0].mxu0 %v602
        %v825 = vpop.f32.mrb[0].mxu0
        %v826 = vadd.f32 %v728, %v825
        %v827 = vpop.f32.mrb[0].mxu0
        %828 = vmatprep.mubr.f32.mxu0 %v641
        %829 = vmatmul.mubr.f32.gmra.mrb[0].mxu0 %v604
        %v830 = vpop.f32.mrb[0].mxu0
        %v831 = vadd.f32 %v728, %v830
        %v832 = vpop.f32.mrb[0].mxu0
        %833 = vdwg.mxu0
        %834 = vmatprep.subr.mxu0 0.0
        %835 = vmatpush1.msra.mxu0 %v709
        %836 = vmatprep.subr.mxu0 0.0
        %837 = vmatpush1.msra.mxu0 %v710
        %838 = vmatprep.subr.mxu0 0.0
        %839 = vmatpush1.msra.mxu0 %v711
        %840 = vmatprep.subr.mxu0 0.0
        %841 = vmatpush1.msra.mxu0 %v712
        %842 = vmatprep.subr.mxu0 0.0
        %843 = vmatpush1.msra.mxu0 %v713
        %844 = vmatprep.subr.mxu0 0.0
        %845 = vmatpush1.msra.mxu0 %v714
        %846 = vmatprep.subr.mxu0 0.0
        %847 = vmatpush1.msra.mxu0 %v715
        %848 = vmatprep.subr.mxu0 0.0
        %849 = vmatpush1.msra.mxu0 %v716
        %850 = vmatprep.subr.mxu0 0.0
        %851 = vmatpush1.msra.mxu0 %v717
        %852 = vmatprep.subr.mxu0 0.0
        %853 = vmatpush1.msra.mxu0 %v718
        %854 = vmatprep.subr.mxu0 0.0
        %855 = vmatpush1.msra.mxu0 %v719
        %856 = vmatprep.subr.mxu0 0.0
        %857 = vmatpush1.msra.mxu0 %v720
        %858 = vmatprep.subr.mxu0 0.0
        %859 = vmatpush1.msra.mxu0 %v721
        %860 = vmatprep.subr.mxu0 0.0
        %861 = vmatpush1.msra.mxu0 %v722
        %862 = vmatprep.subr.mxu0 0.0
        %863 = vmatpush1.msra.mxu0 %v723
        %864 = vmatprep.subr.mxu0 0.0
        %865 = vmatpush1.msra.mxu0 %v724
        %866 = vmatprep.subr.mxu0 0.0
        %867 = vmatpush1.msra.mxu0 0.0
        %868 = vmatprep.subr.mxu0 0.0
        %869 = vmatpush1.msra.mxu0 0.0
        %870 = vmatprep.subr.mxu0 0.0
        %871 = vmatpush1.msra.mxu0 0.0
        %872 = vmatprep.subr.mxu0 0.0
        %873 = vmatpush1.msra.mxu0 0.0
        %874 = vmatprep.subr.mxu0 0.0
        %875 = vmatpush1.msra.mxu0 0.0
        %876 = vmatprep.subr.mxu0 0.0
        %877 = vmatpush1.msra.mxu0 0.0
        %878 = vmatprep.subr.mxu0 0.0
        %879 = vmatpush1.msra.mxu0 0.0
        %880 = vmatprep.subr.mxu0 0.0
        %881 = vmatpush1.msra.mxu0 0.0
        %882 = vmatprep.subr.mxu0 0.0
        %883 = vmatpush1.msra.mxu0 0.0
        %884 = vmatprep.subr.mxu0 0.0
        %885 = vmatpush1.msra.mxu0 0.0
        %886 = vmatprep.subr.mxu0 0.0
        %887 = vmatpush1.msra.mxu0 0.0
        %888 = vmatprep.subr.mxu0 0.0
        %889 = vmatpush1.msra.mxu0 0.0
        %890 = vmatprep.subr.mxu0 0.0
        %891 = vmatpush1.msra.mxu0 0.0
        %892 = vmatprep.subr.mxu0 0.0
        %893 = vmatpush1.msra.mxu0 0.0
        %894 = vmatprep.subr.mxu0 0.0
        %895 = vmatpush1.msra.mxu0 0.0
        %896 = vmatprep.subr.mxu0 0.0
        %897 = vmatpush1.msra.mxu0 0.0
        %898 = vmatprep.mubr.f32.mxu0 0.0
        %899 = vmatmul.mubr.f32.gmra.mrb[0].mxu0 %v653
        %v900 = vpop.f32.mrb[0].mxu0
        %v901 = vadd.f32 %v796, %v900
        %v902 = vpop.f32.mrb[0].mxu0
        %903 = vmatprep.mubr.f32.mxu0 0.0
        %904 = vmatmul.mubr.f32.gmra.mrb[0].mxu0 %v655
        %v905 = vpop.f32.mrb[0].mxu0
        %v906 = vadd.f32 %v801, %v905
        %v907 = vpop.f32.mrb[0].mxu0
        %908 = vmatprep.mubr.f32.mxu0 0.0
        %909 = vmatmul.mubr.f32.gmra.mrb[0].mxu0 %v657
        %v910 = vpop.f32.mrb[0].mxu0
        %v911 = vadd.f32 %v806, %v910
        %v912 = vpop.f32.mrb[0].mxu0
        %913 = vmatprep.mubr.f32.mxu0 0.0
        %914 = vmatmul.mubr.f32.gmra.mrb[0].mxu0 %v659
        %v915 = vpop.f32.mrb[0].mxu0
        %v916 = vadd.f32 %v811, %v915
        %v917 = vpop.f32.mrb[0].mxu0
        %918 = vmatprep.mubr.f32.mxu0 0.0
        %919 = vmatmul.mubr.f32.gmra.mrb[0].mxu0 %v662
        %v920 = vpop.f32.mrb[0].mxu0
        %v921 = vadd.f32 %v816, %v920
        %v922 = vpop.f32.mrb[0].mxu0
        %923 = vmatprep.mubr.f32.mxu0 0.0
        %924 = vmatmul.mubr.f32.gmra.mrb[0].mxu0 %v664
        %v925 = vpop.f32.mrb[0].mxu0
        %v926 = vadd.f32 %v821, %v925
        %v927 = vpop.f32.mrb[0].mxu0
        %928 = vmatprep.mubr.f32.mxu0 0.0
        %929 = vmatmul.mubr.f32.gmra.mrb[0].mxu0 %v666
        %v930 = vpop.f32.mrb[0].mxu0
        %v931 = vadd.f32 %v826, %v930
        %v932 = vpop.f32.mrb[0].mxu0
        %933 = vmatprep.mubr.f32.mxu0 0.0
        %934 = vmatmul.mubr.f32.gmra.mrb[0].mxu0 %v668
        %v935 = vpop.f32.mrb[0].mxu0
        %v936 = vadd.f32 %v831, %v935
        %v937 = vpop.f32.mrb[0].mxu0
        %938 = vdwg.mxu0
        %v939 = vld [vmem:[%s349] sm:$0xff]
        %v940 = vld [vmem:[%s349 + $0x8] sm:$0xff]
        %v941 = vld [vmem:[%s349 + $0x10] sm:$0xff]
        %v942 = vld [vmem:[%s349 + $0x18] sm:$0xff]
        %v943 = vld [vmem:[%s349 + $0x20] sm:$0xff]
        %v944 = vld [vmem:[%s349 + $0x28] sm:$0xff]
        %v945 = vld [vmem:[%s349 + $0x30] sm:$0xff]
        %v946 = vld [vmem:[%s349 + $0x38] sm:$0xff]
        %v947 = vld [vmem:[#allocation10] sm:$0xff]
        %v948 = vld [vmem:[#allocation10 + $0x8] sm:$0xff]
        %v949 = vld [vmem:[#allocation10 + $0x10] sm:$0xff]
        %v950 = vld [vmem:[#allocation10 + $0x18] sm:$0xff]
        %v951 = vld [vmem:[#allocation10 + $0x20] sm:$0xff]
        %v952 = vld [vmem:[#allocation10 + $0x28] sm:$0xff]
        %v953 = vld [vmem:[#allocation10 + $0x30] sm:$0xff]
        %v954 = vld [vmem:[#allocation10 + $0x38] sm:$0xff]
        %v955 = vlaneseq
        %v956 = vshrl.u32 %v955, 7
        %v957 = vsub.s32 2, %v956
        %v958 = vrot.slane %v432, %v957
        %vm959 = vcmask 523264
        %v961 = vsel %vm959, %v939, 0
        %v964 = vsel %vm959, %v940, 0
        %v967 = vsel %vm959, %v941, 0
        %v970 = vsel %vm959, %v942, 0
        %v973 = vsel %vm959, %v943, 0
        %v976 = vsel %vm959, %v944, 0
        %v979 = vsel %vm959, %v945, 0
        %v982 = vsel %vm959, %v946, 0
        %984 = vmatprep.subr.mxu0 0.0
        %985 = vmatpush1.msra.mxu0 %v947
        %986 = vmatprep.subr.mxu0 0.0
        %987 = vmatpush1.msra.mxu0 %v948
        %988 = vmatprep.subr.mxu0 0.0
        %989 = vmatpush1.msra.mxu0 %v949
        %990 = vmatprep.subr.mxu0 0.0
        %991 = vmatpush1.msra.mxu0 %v950
        %992 = vmatprep.subr.mxu0 0.0
        %993 = vmatpush1.msra.mxu0 %v951
        %994 = vmatprep.subr.mxu0 0.0
        %995 = vmatpush1.msra.mxu0 %v952
        %996 = vmatprep.subr.mxu0 0.0
        %997 = vmatpush1.msra.mxu0 %v953
        %998 = vmatprep.subr.mxu0 0.0
        %999 = vmatpush1.msra.mxu0 %v954
        %1000 = vmatprep.subr.mxu0 0.0
        %1001 = vmatpush1.msra.mxu0 0.0
        %1002 = vmatprep.subr.mxu0 0.0
        %1003 = vmatpush1.msra.mxu0 0.0
        %1004 = vmatprep.subr.mxu0 0.0
        %1005 = vmatpush1.msra.mxu0 0.0
        %1006 = vmatprep.subr.mxu0 0.0
        %1007 = vmatpush1.msra.mxu0 0.0
        %1008 = vmatprep.subr.mxu0 0.0
        %1009 = vmatpush1.msra.mxu0 0.0
        %1010 = vmatprep.subr.mxu0 0.0
        %1011 = vmatpush1.msra.mxu0 0.0
        %1012 = vmatprep.subr.mxu0 0.0
        %1013 = vmatpush1.msra.mxu0 0.0
        %1014 = vmatprep.subr.mxu0 0.0
        %1015 = vmatpush1.msra.mxu0 0.0
        %1016 = vmatprep.subr.mxu0 0.0
        %1017 = vmatpush1.msra.mxu0 0.0
        %1018 = vmatprep.subr.mxu0 0.0
        %1019 = vmatpush1.msra.mxu0 0.0
        %1020 = vmatprep.subr.mxu0 0.0
        %1021 = vmatpush1.msra.mxu0 0.0
        %1022 = vmatprep.subr.mxu0 0.0
        %1023 = vmatpush1.msra.mxu0 0.0
        %1024 = vmatprep.subr.mxu0 0.0
        %1025 = vmatpush1.msra.mxu0 0.0
        %1026 = vmatprep.subr.mxu0 0.0
        %1027 = vmatpush1.msra.mxu0 0.0
        %1028 = vmatprep.subr.mxu0 0.0
        %1029 = vmatpush1.msra.mxu0 0.0
        %1030 = vmatprep.subr.mxu0 0.0
        %1031 = vmatpush1.msra.mxu0 0.0
        %1032 = vmatprep.subr.mxu0 0.0
        %1033 = vmatpush1.msra.mxu0 0.0
        %1034 = vmatprep.subr.mxu0 0.0
        %1035 = vmatpush1.msra.mxu0 0.0
        %1036 = vmatprep.subr.mxu0 0.0
        %1037 = vmatpush1.msra.mxu0 0.0
        %1038 = vmatprep.subr.mxu0 0.0
        %1039 = vmatpush1.msra.mxu0 0.0
        %1040 = vmatprep.subr.mxu0 0.0
        %1041 = vmatpush1.msra.mxu0 0.0
        %1042 = vmatprep.subr.mxu0 0.0
        %1043 = vmatpush1.msra.mxu0 0.0
        %1044 = vmatprep.subr.mxu0 0.0
        %1045 = vmatpush1.msra.mxu0 0.0
        %1046 = vmatprep.subr.mxu0 0.0
        %1047 = vmatpush1.msra.mxu0 0.0
        %1048 = vmatprep.mubr.f32.mxu0 0.0
        %1049 = vmatmul.mubr.f32.gmra.mrb[0].mxu0 %v961
        %v1050 = vpop.f32.mrb[0].mxu0
        %v1051 = vadd.f32 %v958, %v1050
        %v1052 = vpop.f32.mrb[0].mxu0
        %1053 = vmatprep.mubr.f32.mxu0 0.0
        %1054 = vmatmul.mubr.f32.gmra.mrb[0].mxu0 %v964
        %v1055 = vpop.f32.mrb[0].mxu0
        %v1056 = vadd.f32 %v958, %v1055
        %v1057 = vpop.f32.mrb[0].mxu0
        %1058 = vmatprep.mubr.f32.mxu0 0.0
        %1059 = vmatmul.mubr.f32.gmra.mrb[0].mxu0 %v967
        %v1060 = vpop.f32.mrb[0].mxu0
        %v1061 = vadd.f32 %v958, %v1060
        %v1062 = vpop.f32.mrb[0].mxu0
        %1063 = vmatprep.mubr.f32.mxu0 0.0
        %1064 = vmatmul.mubr.f32.gmra.mrb[0].mxu0 %v970
        %v1065 = vpop.f32.mrb[0].mxu0
        %v1066 = vadd.f32 %v958, %v1065
        %v1067 = vpop.f32.mrb[0].mxu0
        %1068 = vmatprep.mubr.f32.mxu0 0.0
        %1069 = vmatmul.mubr.f32.gmra.mrb[0].mxu0 %v973
        %v1070 = vpop.f32.mrb[0].mxu0
        %v1071 = vadd.f32 %v958, %v1070
        %v1072 = vpop.f32.mrb[0].mxu0
        %1073 = vmatprep.mubr.f32.mxu0 0.0
        %1074 = vmatmul.mubr.f32.gmra.mrb[0].mxu0 %v976
        %v1075 = vpop.f32.mrb[0].mxu0
        %v1076 = vadd.f32 %v958, %v1075
        %v1077 = vpop.f32.mrb[0].mxu0
        %1078 = vmatprep.mubr.f32.mxu0 0.0
        %1079 = vmatmul.mubr.f32.gmra.mrb[0].mxu0 %v979
        %v1080 = vpop.f32.mrb[0].mxu0
        %v1081 = vadd.f32 %v958, %v1080
        %v1082 = vpop.f32.mrb[0].mxu0
        %1083 = vmatprep.mubr.f32.mxu0 0.0
        %1084 = vmatmul.mubr.f32.gmra.mrb[0].mxu0 %v982
        %v1085 = vpop.f32.mrb[0].mxu0
        %v1086 = vadd.f32 %v958, %v1085
        %v1087 = vpop.f32.mrb[0].mxu0
        %1088 = vdwg.mxu0
        %v1089 = vadd.f32 %v901, %v1051
        %v1090 = vadd.f32 %v906, %v1056
        %v1091 = vadd.f32 %v911, %v1061
        %v1092 = vadd.f32 %v916, %v1066
        %v1093 = vadd.f32 %v921, %v1071
        %v1094 = vadd.f32 %v926, %v1076
        %v1095 = vadd.f32 %v931, %v1081
        %v1096 = vadd.f32 %v936, %v1086
        %v1097 = vmax.f32 %v1089, 0.0
        %v1098 = vmax.f32 %v1090, 0.0
        %v1099 = vmax.f32 %v1091, 0.0
        %v1100 = vmax.f32 %v1092, 0.0
        %v1101 = vmax.f32 %v1093, 0.0
        %v1102 = vmax.f32 %v1094, 0.0
        %v1103 = vmax.f32 %v1095, 0.0
        %v1104 = vmax.f32 %v1096, 0.0
        %1105 = vst [vmem:[%s408] sm:$0xff] %v1097
        %1106 = vst [vmem:[%s408 + $0x8] sm:$0xff] %v1098
        %1107 = vst [vmem:[%s408 + $0x10] sm:$0xff] %v1099
        %1108 = vst [vmem:[%s408 + $0x18] sm:$0xff] %v1100
        %1109 = vst [vmem:[%s408 + $0x20] sm:$0xff] %v1101
        %1110 = vst [vmem:[%s408 + $0x28] sm:$0xff] %v1102
        %1111 = vst [vmem:[%s408 + $0x30] sm:$0xff] %v1103
        %1112 = vst [vmem:[%s408 + $0x38] sm:$0xff] %v1104
        %s1113 = sand.u32 %s197, 1
        %s1114 = scalar_lea.sflag [#allocation4], %s1113
        %s1115 = sand.u32 %s197, 1
        %s1116 = smul.addr %s1115, 64
        %s1117 = scalar_lea.vmem [#allocation11], %s1116
        // Predicated region
        $region65: #{tpu_custom_call.1} parent=43 // pred_check
          %p1118 = pneg %p207
        $region66: #{tpu_custom_call.1} parent=43 // pred_check_branch
          %1120 = sbr.rel (%p1118) target = $region68
        $region67: #{tpu_custom_call.1} parent=43 // pred_region
          %s1121 = smul.u32 2, %s31
          %s1123 = ssub.s32 1024, 1024
          %1124 = vsyncadd %s1114, %s1123
          %s1125 = smul.addr %s1121, 4
          %s1126 = smul.addr %s32, 16
          %s1127 = sadd.s32 %s1125, %s1126
          %s1128 = smul.addr %s1127, 128
          %s1129 = scalar_lea.hbm %s6, %s1128
          %s1130 = sshll.u32 %s1117, 4
          %s1131 = int_to_ptr.vmem [resolvable:$true] %s1130
          %1136 = dma.vmem_to_hbm [thread:$0]  %s1131, 1024, %s1129, %s1114, 128, 128, 8
        $region68: #{tpu_custom_call.1} parent=43 // pred_fallthru
          _
      $region44: #{tpu_custom_call.1} parent=5 // pred_fallthru
        _
      %p1137 = scmp.le.s32.totalorder 2, %s22
      // Predicated region
      $region69: #{tpu_custom_call.1} parent=5 // pred_check
        %p1138 = pneg %p1137
      $region70: #{tpu_custom_call.1} parent=5 // pred_check_branch
        %1140 = sbr.rel (%p1138) target = $region72
      $region71: #{tpu_custom_call.1} parent=5 // pred_region
        %s1141 = ssub.s32 %s22, 2
        // Predicated region
        $region73: #{tpu_custom_call.1} parent=71 // pred_check
          %p1142 = pneg %p213
        $region74: #{tpu_custom_call.1} parent=71 // pred_check_branch
          %1144 = sbr.rel (%p1142) target = $region76
        $region75: #{tpu_custom_call.1} parent=71 // pred_region
          %s1145 = sand.u32 %s198, 1
          %s1146 = scalar_lea.sflag [#allocation4], %s1145
          %s1147 = sand.u32 %s198, 1
          %s1148 = smul.addr %s1147, 64
          %s1149 = scalar_lea.vmem [#allocation11], %s1148
          %1150 = dma.done %s1146, 1024
        $region76: #{tpu_custom_call.1} parent=71 // pred_fallthru
          _
      $region72: #{tpu_custom_call.1} parent=5 // pred_fallthru
        _
    $region6: #{tpu_custom_call.1} parent=1 // loop_footer
      %s26 = sadd.s32 1, %s22
    $region7: #{tpu_custom_call.1} parent=1 // loop_footer_branch
      %21 = sbr.rel target = $region3
    $region8: #{tpu_custom_call.1} parent=1 // loop_exit
      _
    %1151 = vsyncpa [#allocation3], 1
    %s1152 = scalar_lea.sflag [#allocation3], 1
    %1153 = vsyncpa %s1152, 1
    %1154 = vsyncpa [#allocation6], 1
    %s1155 = scalar_lea.sflag [#allocation6], 1
    %1156 = vsyncpa %s1155, 1
    %1157 = vsyncpa [#allocation9], 1
    %1158 = vsyncpa [#allocation4], 1
    %s1159 = scalar_lea.sflag [#allocation4], 1
    %1160 = vsyncpa %s1159, 1

</llo_original>
